<compile_context>
chip_gen: v6e
topology: v6e:2x2x1
jax: 0.10.0
libtpu: 0.0.40
codegen_flags: <defaults>
</compile_context>

<pallas_src>
import functools

import numpy as np
import jax
import jax.numpy as jnp
from jax.experimental import pallas as pl
from jax.experimental.pallas import tpu as pltpu


def _round_up(x, m):
    return (x + m - 1) // m * m


def _choose_tile(rows):
    """Row tile: single tile for small problems, 2048-row tiles otherwise,
    always keeping >= 2 tiles when rows > 1024 so v7x megacore has work for
    both TensorCores.  Multiples of 32 (int8 mask sublane packing)."""
    r32 = _round_up(rows, 32)
    if r32 <= 1024:
        return r32
    half = _round_up((rows + 1) // 2, 32)
    return min(2048, half)


def _make_kernel(training, return_pre):
    def kernel(*refs):
        # inputs: x (TILE_R, K), w (K, M), scale (1, M), bias (1, M), [mask (TILE_R, M) i8]
        # outputs: motifs (TILE_R, M) f32, [pre (TILE_R, M) f32]
        if training:
            x_ref, w_ref, scale_ref, bias_ref, mask_ref = refs[:5]
            out_refs = refs[5:]
        else:
            x_ref, w_ref, scale_ref, bias_ref = refs[:4]
            out_refs = refs[4:]

        pre = jnp.dot(x_ref[...], w_ref[...], preferred_element_type=jnp.float32)
        adj = jnp.maximum(pre * scale_ref[...] + bias_ref[...], 0.0)
        if training:
            motifs = jnp.where(mask_ref[...] != 0, adj, pre)   # randomly_interleave
        else:
            motifs = adj
        out_refs[0][...] = motifs
        if return_pre:
            out_refs[1][...] = pre

    return kernel


@functools.lru_cache(maxsize=8)
def _interleave_mask_np(B, L, M):
    # Exactly matches the PyTorch module: RandomState(0).choice(2, size=motifs.shape).
    # Cached as NumPy (host) so multi-device callers don't get a pinned jnp array.
    m = np.random.RandomState(0).choice(2, size=(B, L, M)).astype(np.int8)
    return m.reshape(B * L, M)


def robustly_adjusted_motifs(x_ncl, weight, scale, bias, *, training=True,
                             return_pre=True, input_dtype=jnp.float32):
    """x_ncl: (B, Cin, L) float32 (PyTorch NCL). Returns dict of (B, L, M) arrays."""
    B, Cin, L = x_ncl.shape
    W, Cw, M = weight.shape
    assert Cw == Cin
    assert W % 2 == 1, "padding='same' split below assumes an odd kernel width"
    pad = W - 1
    K = W * Cin
    rows = B * L

    TILE_R = _choose_tile(rows)
    R_pad = _round_up(rows, TILE_R)
    n_tiles = R_pad // TILE_R

    # --- im2col + layout plumbing in the XLA wrapper (not in the kernel) ---
    x_nlc = jnp.transpose(x_ncl, (0, 2, 1))                              # (B, L, Cin)
    x_p = jnp.pad(x_nlc, ((0, 0), (pad // 2, pad - pad // 2), (0, 0)))   # 'same' padding
    patches = jnp.stack([x_p[:, w:w + L, :] for w in range(W)], axis=2)  # (B, L, W, Cin)
    patches = patches.reshape(rows, K)
    if R_pad != rows:
        patches = jnp.pad(patches, ((0, R_pad - rows), (0, 0)))          # (R_pad, K)
    patches = patches.astype(input_dtype)

    w2d = weight.reshape(K, M).astype(input_dtype)                       # (K, M)
    scale2 = jnp.reshape(scale, (1, M)).astype(jnp.float32)
    bias2 = jnp.reshape(bias, (1, M)).astype(jnp.float32)

    inputs = [patches, w2d, scale2, bias2]
    in_specs = [
        pl.BlockSpec((TILE_R, K), lambda r: (r, 0)),   # K full-extent: no zero pad in HBM
        pl.BlockSpec((K, M), lambda r: (0, 0)),        # weight resident across row tiles
        pl.BlockSpec((1, M), lambda r: (0, 0)),
        pl.BlockSpec((1, M), lambda r: (0, 0)),
    ]
    if training:
        mask = jnp.asarray(_interleave_mask_np(B, L, M))                 # int8 (rows, M)
        if R_pad != rows:
            mask = jnp.pad(mask, ((0, R_pad - rows), (0, 0)))
        inputs.append(mask)
        in_specs.append(pl.BlockSpec((TILE_R, M), lambda r: (r, 0)))

    out_shape = [jax.ShapeDtypeStruct((R_pad, M), jnp.float32)]
    out_specs = [pl.BlockSpec((TILE_R, M), lambda r: (r, 0))]
    if return_pre:
        out_shape.append(jax.ShapeDtypeStruct((R_pad, M), jnp.float32))
        out_specs.append(pl.BlockSpec((TILE_R, M), lambda r: (r, 0)))

    outs = pl.pallas_call(
        _make_kernel(training, return_pre),
        out_shape=tuple(out_shape),
        grid_spec=pltpu.PrefetchScalarGridSpec(
            num_scalar_prefetch=0,
            grid=(n_tiles,),
            in_specs=in_specs,
            out_specs=out_specs,
        ),
        compiler_params=pltpu.CompilerParams(dimension_semantics=("parallel",)),
    )(*inputs)

    result = {"motifs": outs[0][:rows].reshape(B, L, M)}
    if return_pre:
        result["pre_adjustment_motifs"] = outs[1][:rows].reshape(B, L, M)
    return result


def _reference(x_ncl, weight, scale, bias, training=True):
    B, Cin, L = x_ncl.shape
    W, _, M = weight.shape
    pad = W - 1
    x = np.transpose(np.asarray(x_ncl), (0, 2, 1))
    x_pad = np.pad(x, ((0, 0), (pad // 2, pad - pad // 2), (0, 0)))
    pre = np.zeros((B, L, M), np.float32)
    for w in range(W):
        pre += x_pad[:, w:w + L, :] @ np.asarray(weight)[w]
    adj = np.maximum(pre * np.asarray(scale) + np.asarray(bias), 0.0)
    if training:
        mask = np.random.RandomState(0).choice(2, size=(B, L, M)).astype(bool)
        motifs = np.where(mask, adj, pre)
    else:
        motifs = adj
    return motifs, pre


if __name__ == "__main__":
    B, Cin, L, W, M = 2, 4, 32, 9, 128

    key = jax.random.PRNGKey(0)
    kx, kw, ks, kb = jax.random.split(key, 4)
    x = jax.random.normal(kx, (B, Cin, L), dtype=jnp.float32)          # PyTorch NCL input
    weight = jax.random.normal(kw, (W, Cin, M), dtype=jnp.float32) * 0.1
    scale = 1.0 + 0.1 * jax.random.normal(ks, (1, M), dtype=jnp.float32)
    bias = 0.1 * jax.random.normal(kb, (1, M), dtype=jnp.float32)

    ref_motifs, ref_pre = _reference(x, weight, scale, bias, training=True)
    ref_motifs_e, ref_pre_e = _reference(x, weight, scale, bias, training=False)

    # Training path (mask interleave), both outputs.
    out = robustly_adjusted_motifs(x, weight, scale, bias, training=True)
    jax.block_until_ready(out)
    np.testing.assert_allclose(np.asarray(out["pre_adjustment_motifs"]), ref_pre,
                               rtol=1e-5, atol=1e-5)
    np.testing.assert_allclose(np.asarray(out["motifs"]), ref_motifs,
                               rtol=1e-5, atol=1e-5)

    # Eval path: specialized kernel (no mask input, no select).
    out_eval = robustly_adjusted_motifs(x, weight, scale, bias, training=False)
    jax.block_until_ready(out_eval)
    np.testing.assert_allclose(np.asarray(out_eval["motifs"]), ref_motifs_e,
                               rtol=1e-5, atol=1e-5)
    np.testing.assert_allclose(np.asarray(out_eval["pre_adjustment_motifs"]), ref_pre_e,
                               rtol=1e-5, atol=1e-5)

    # Motifs-only variant (skips the 'pre' store — half the write bytes).
    out_slim = robustly_adjusted_motifs(x, weight, scale, bias, training=True,
                                        return_pre=False)
    jax.block_until_ready(out_slim)
    np.testing.assert_allclose(np.asarray(out_slim["motifs"]), ref_motifs,
                               rtol=1e-5, atol=1e-5)

    # Optional bf16-input path (matmul operands only); loose tolerance by design.
    out_bf16 = robustly_adjusted_motifs(x, weight, scale, bias, training=True,
                                        input_dtype=jnp.bfloat16)
    jax.block_until_ready(out_bf16)
    np.testing.assert_allclose(np.asarray(out_bf16["motifs"]), ref_motifs,
                               rtol=5e-2, atol=5e-2)

    print("KERNEL_OK")
</pallas_src>

<mosaic_0001>
module attributes {stable_mosaic.version = 11 : i64} {
  func.func @kernel(%arg0: i32, %arg1: memref<64x36xf32, #tpu.memory_space<vmem>>, %arg2: memref<36x128xf32, #tpu.memory_space<vmem>>, %arg3: memref<1x128xf32, #tpu.memory_space<vmem>>, %arg4: memref<1x128xf32, #tpu.memory_space<vmem>>, %arg5: memref<64x128xi8, #tpu.memory_space<vmem>>, %arg6: memref<64x128xf32, #tpu.memory_space<vmem>>, %arg7: memref<64x128xf32, #tpu.memory_space<vmem>>) attributes {dimension_semantics = [#tpu.dimension_semantics<parallel>], iteration_bounds = array<i64: 1>, scalar_prefetch = 0 : i64, scratch_operands = 0 : i64, tpu.core_type = #tpu.core_type<tc>, window_params = [{transform_indices = @transform_0, window_bounds = array<i64: 64, 36>}, {pipeline_mode = #tpu.pipeline_mode<synchronous>, transform_indices = @transform_1, window_bounds = array<i64: 36, 128>}, {pipeline_mode = #tpu.pipeline_mode<synchronous>, transform_indices = @transform_2, window_bounds = array<i64: 1, 128>}, {pipeline_mode = #tpu.pipeline_mode<synchronous>, transform_indices = @transform_3, window_bounds = array<i64: 1, 128>}, {transform_indices = @transform_4, window_bounds = array<i64: 64, 128>}, {transform_indices = @transform_5, window_bounds = array<i64: 64, 128>}, {transform_indices = @transform_6, window_bounds = array<i64: 64, 128>}]} {
    %c0 = arith.constant 0 : index
    %c0_0 = arith.constant 0 : index
    %0 = vector.load %arg1[%c0, %c0_0] : memref<64x36xf32, #tpu.memory_space<vmem>>, vector<64x36xf32>
    %c0_1 = arith.constant 0 : index
    %c0_2 = arith.constant 0 : index
    %1 = vector.load %arg2[%c0_1, %c0_2] : memref<36x128xf32, #tpu.memory_space<vmem>>, vector<36x128xf32>
    %cst = arith.constant dense<0.000000e+00> : vector<64x128xf32>
    %2 = tpu.matmul %0, %1, %cst {dimension_numbers = #tpu.dot_dimension_numbers<[1], [0], [0], [1], [0, 0, 1, 1], [], []>} : vector<64x36xf32>, vector<36x128xf32>, vector<64x128xf32> -> vector<64x128xf32>
    %c0_3 = arith.constant 0 : index
    %c0_4 = arith.constant 0 : index
    %3 = vector.load %arg3[%c0_3, %c0_4] : memref<1x128xf32, #tpu.memory_space<vmem>>, vector<1x128xf32>
    %4 = vector.broadcast %3 : vector<1x128xf32> to vector<64x128xf32>
    %5 = arith.mulf %2, %4 : vector<64x128xf32>
    %c0_5 = arith.constant 0 : index
    %c0_6 = arith.constant 0 : index
    %6 = vector.load %arg4[%c0_5, %c0_6] : memref<1x128xf32, #tpu.memory_space<vmem>>, vector<1x128xf32>
    %7 = vector.broadcast %6 : vector<1x128xf32> to vector<64x128xf32>
    %8 = arith.addf %5, %7 : vector<64x128xf32>
    %cst_7 = arith.constant 0.000000e+00 : f32
    %9 = vector.broadcast %cst_7 : f32 to vector<64x128xf32>
    %10 = arith.maximumf %8, %9 : vector<64x128xf32>
    %c0_8 = arith.constant 0 : index
    %c0_9 = arith.constant 0 : index
    %11 = vector.load %arg5[%c0_8, %c0_9] : memref<64x128xi8, #tpu.memory_space<vmem>>, vector<64x128xi8>
    %c0_i8 = arith.constant 0 : i8
    %12 = vector.broadcast %c0_i8 : i8 to vector<64x128xi8>
    %13 = arith.cmpi ne, %11, %12 : vector<64x128xi8>
    %14 = arith.select %13, %10, %2 : vector<64x128xi1>, vector<64x128xf32>
    %c0_10 = arith.constant 0 : index
    %c0_11 = arith.constant 0 : index
    %15 = vector.load %arg6[%c0_10, %c0_11] : memref<64x128xf32, #tpu.memory_space<vmem>>, vector<64x128xf32>
    tpu.vector_store %arg6[%c0_10, %c0_11], %14 {strides = array<i32>} : memref<64x128xf32, #tpu.memory_space<vmem>>, vector<64x128xf32>,
    %c0_12 = arith.constant 0 : index
    %c0_13 = arith.constant 0 : index
    %16 = vector.load %arg7[%c0_12, %c0_13] : memref<64x128xf32, #tpu.memory_space<vmem>>, vector<64x128xf32>
    tpu.vector_store %arg7[%c0_12, %c0_13], %2 {strides = array<i32>} : memref<64x128xf32, #tpu.memory_space<vmem>>, vector<64x128xf32>,
    return
  }
  func.func @transform_0(%arg0: i32) -> (i32, i32) {
    %c0_i32 = arith.constant 0 : i32
    %c0_i32_0 = arith.constant 0 : i32
    return %arg0, %c0_i32 : i32, i32
  }
  func.func @transform_1(%arg0: i32) -> (i32, i32) {
    %c0_i32 = arith.constant 0 : i32
    %c0_i32_0 = arith.constant 0 : i32
    %c0_i32_1 = arith.constant 0 : i32
    return %c0_i32, %c0_i32_0 : i32, i32
  }
  func.func @transform_2(%arg0: i32) -> (i32, i32) {
    %c0_i32 = arith.constant 0 : i32
    %c0_i32_0 = arith.constant 0 : i32
    %c0_i32_1 = arith.constant 0 : i32
    return %c0_i32, %c0_i32_0 : i32, i32
  }
  func.func @transform_3(%arg0: i32) -> (i32, i32) {
    %c0_i32 = arith.constant 0 : i32
    %c0_i32_0 = arith.constant 0 : i32
    %c0_i32_1 = arith.constant 0 : i32
    return %c0_i32, %c0_i32_0 : i32, i32
  }
  func.func @transform_4(%arg0: i32) -> (i32, i32) {
    %c0_i32 = arith.constant 0 : i32
    %c0_i32_0 = arith.constant 0 : i32
    return %arg0, %c0_i32 : i32, i32
  }
  func.func @transform_5(%arg0: i32) -> (i32, i32) {
    %c0_i32 = arith.constant 0 : i32
    %c0_i32_0 = arith.constant 0 : i32
    return %arg0, %c0_i32 : i32, i32
  }
  func.func @transform_6(%arg0: i32) -> (i32, i32) {
    %c0_i32 = arith.constant 0 : i32
    %c0_i32_0 = arith.constant 0 : i32
    return %arg0, %c0_i32 : i32, i32
  }
}

</mosaic_0001>

<llo_original>
// kernel: tpu_custom_call.1
$region0: #{tpu_custom_call.1}
  #allocation0 [shape = 'u32[]', space=smem, size = 0x4, offset = 0x4, fixed_abs, tag = 'smem constant byte address 0x4 - core index']
  #allocation1 [shape = 'u32[144,128]{1,0:T(1,128)}', space=vmem, size = 0x12000, scoped, tag = 'internal scratch']
  %s0 = inlined_call_operand.vmem [shape: f32[64,36], index: 0, kind: input, shape index: {}]
  %s1 = inlined_call_operand.vmem [shape: f32[36,128], index: 1, kind: input, shape index: {}]
  %s2 = inlined_call_operand.vmem [shape: f32[1,128], index: 2, kind: input, shape index: {}]
  %s3 = inlined_call_operand.vmem [shape: f32[1,128], index: 3, kind: input, shape index: {}]
  %s4 = inlined_call_operand.vmem [shape: s8[64,128], index: 4, kind: input, shape index: {}]
  %s5 = inlined_call_operand.hbm [shape: f32[64,128], index: 5, kind: output, shape index: {0}]
  %s6 = inlined_call_operand.hbm [shape: f32[64,128], index: 6, kind: output, shape index: {1}]
  %7 = xla_tuple %s5, %s6
  %s8 = sld [smem:[#allocation0]]
  $region38: #{tpu_custom_call.1} parent=0
    _
  %s10 = ssub.s32 1, %s8
  %s11 = scalar_select 0, %s10, %s8
  $region1: #{tpu_custom_call.1} parent=0
    #allocation2 [shape = 'u8[32768]{0}', space=vmem, size = 0x8000, scoped, tag = 'output window, operand 0, single buffered']
    #allocation3 [shape = 's32[1]{0}', space=sflag, size = 0x4, scoped, tag = 'scoped memory for tpu_custom_call.1']
    #allocation4 [shape = 'u8[32768]{0}', space=vmem, size = 0x8000, scoped, tag = 'output window, operand 1, single buffered']
    #allocation5 [shape = 's32[1]{0}', space=sflag, size = 0x4, scoped, tag = 'scoped memory for tpu_custom_call.1']
    %12 = vsyncpa [#allocation3], 0
    %13 = vsyncpa [#allocation5], 0
    // Predicated region
    $region2: #{tpu_custom_call.1} parent=1 // pred_check
      _
    $region3: #{tpu_custom_call.1} parent=1 // pred_check_branch
      %15 = sbr.rel (0) target = $region5
    $region4: #{tpu_custom_call.1} parent=1 // pred_region
      _
    $region5: #{tpu_custom_call.1} parent=1 // pred_fallthru
      _
    // Predicated region
    $region6: #{tpu_custom_call.1} parent=1 // pred_check
      _
    $region7: #{tpu_custom_call.1} parent=1 // pred_check_branch
      %17 = sbr.rel (0) target = $region9
    $region8: #{tpu_custom_call.1} parent=1 // pred_region
      _
    $region9: #{tpu_custom_call.1} parent=1 // pred_fallthru
      _
    // Predicated region
    $region10: #{tpu_custom_call.1} parent=1 // pred_check
      _
    $region11: #{tpu_custom_call.1} parent=1 // pred_check_branch
      %19 = sbr.rel (0) target = $region13
    $region12: #{tpu_custom_call.1} parent=1 // pred_region
      _
    $region13: #{tpu_custom_call.1} parent=1 // pred_fallthru
      _
    // Predicated region
    $region14: #{tpu_custom_call.1} parent=1 // pred_check
      _
    $region15: #{tpu_custom_call.1} parent=1 // pred_check_branch
      %21 = sbr.rel (0) target = $region17
    $region16: #{tpu_custom_call.1} parent=1 // pred_region
      _
    $region17: #{tpu_custom_call.1} parent=1 // pred_fallthru
      _
    // Predicated region
    $region18: #{tpu_custom_call.1} parent=1 // pred_check
      _
    $region19: #{tpu_custom_call.1} parent=1 // pred_check_branch
      %23 = sbr.rel (0) target = $region21
    $region20: #{tpu_custom_call.1} parent=1 // pred_region
      _
    $region21: #{tpu_custom_call.1} parent=1 // pred_fallthru
      _
    %v26 = vld [vmem:[%s0] sm:$0xff]
    %v27 = vld [vmem:[%s0 + $0x8] sm:$0xff]
    %v28 = vld [vmem:[%s0 + $0x10] sm:$0xff]
    %v29 = vld [vmem:[%s0 + $0x18] sm:$0xff]
    %v30 = vld [vmem:[%s0 + $0x20] sm:$0xff]
    %v31 = vld [vmem:[%s0 + $0x28] sm:$0xff]
    %v32 = vld [vmem:[%s0 + $0x30] sm:$0xff]
    %v33 = vld [vmem:[%s0 + $0x38] sm:$0xff]
    %v34 = vld [vmem:[%s1] sm:$0xff]
    %v35 = vld [vmem:[%s1 + $0x8] sm:$0xff]
    %v36 = vld [vmem:[%s1 + $0x10] sm:$0xff]
    %v37 = vld [vmem:[%s1 + $0x18] sm:$0xff]
    %v38 = vld [vmem:[%s1 + $0x20] sm:$0xf]
    %vm39 = vcmask 293888
    %v41 = vsel %vm39, %v26, 0
    %v44 = vsel %vm39, %v27, 0
    %v47 = vsel %vm39, %v28, 0
    %v50 = vsel %vm39, %v29, 0
    %v53 = vsel %vm39, %v30, 0
    %v56 = vsel %vm39, %v31, 0
    %v59 = vsel %vm39, %v32, 0
    %v62 = vsel %vm39, %v33, 0
    %vm64 = vcmask 1043456
    %v66 = vsel %vm64, %v38, 0
    %68 = vmatprep.subr.mxu0 0.0
    %69 = vmatpush1.msra.mxu0 0.0
    %70 = vmatprep.subr.mxu0 0.0
    %71 = vmatpush1.msra.mxu0 0.0
    %72 = vmatprep.subr.mxu0 0.0
    %73 = vmatpush1.msra.mxu0 0.0
    %74 = vmatprep.subr.mxu0 0.0
    %75 = vmatpush1.msra.mxu0 0.0
    %76 = vmatprep.subr.mxu0 0.0
    %77 = vmatpush1.msra.mxu0 0.0
    %78 = vmatprep.subr.mxu0 0.0
    %79 = vmatpush1.msra.mxu0 0.0
    %80 = vmatprep.subr.mxu0 0.0
    %81 = vmatpush1.msra.mxu0 0.0
    %82 = vmatprep.subr.mxu0 0.0
    %83 = vmatpush1.msra.mxu0 0.0
    %84 = vmatprep.subr.mxu0 0.0
    %85 = vmatpush1.msra.mxu0 0.0
    %86 = vmatprep.subr.mxu0 0.0
    %87 = vmatpush1.msra.mxu0 0.0
    %88 = vmatprep.subr.mxu0 0.0
    %89 = vmatpush1.msra.mxu0 0.0
    %90 = vmatprep.subr.mxu0 0.0
    %91 = vmatpush1.msra.mxu0 %v66
    %92 = vmatprep.subr.mxu0 0.0
    %93 = vmatpush1.msra.mxu0 %v37
    %94 = vmatprep.subr.mxu0 0.0
    %95 = vmatpush1.msra.mxu0 %v36
    %96 = vmatprep.subr.mxu0 0.0
    %97 = vmatpush1.msra.mxu0 %v35
    %98 = vmatprep.subr.mxu0 0.0
    %99 = vmatpush1.msra.mxu0 %v34
    %100 = vmatprep.subr.mxu0 0.0
    %101 = vmatpush2.msra.mxu0 0.0
    %102 = vmatprep.subr.mxu0 0.0
    %103 = vmatpush2.msra.mxu0 0.0
    %104 = vmatprep.subr.mxu0 0.0
    %105 = vmatpush2.msra.mxu0 0.0
    %106 = vmatprep.subr.mxu0 0.0
    %107 = vmatpush2.msra.mxu0 0.0
    %108 = vmatprep.subr.mxu0 0.0
    %109 = vmatpush2.msra.mxu0 0.0
    %110 = vmatprep.subr.mxu0 0.0
    %111 = vmatpush2.msra.mxu0 0.0
    %112 = vmatprep.subr.mxu0 0.0
    %113 = vmatpush2.msra.mxu0 0.0
    %114 = vmatprep.subr.mxu0 0.0
    %115 = vmatpush2.msra.mxu0 0.0
    %116 = vmatprep.subr.mxu0 0.0
    %117 = vmatpush2.msra.mxu0 0.0
    %118 = vmatprep.subr.mxu0 0.0
    %119 = vmatpush2.msra.mxu0 0.0
    %120 = vmatprep.subr.mxu0 0.0
    %121 = vmatpush2.msra.mxu0 0.0
    %122 = vmatprep.subr.mxu0 0.0
    %123 = vmatpush2.msra.mxu0 0.0
    %124 = vmatprep.subr.mxu0 0.0
    %125 = vmatpush2.msra.mxu0 0.0
    %126 = vmatprep.subr.mxu0 0.0
    %127 = vmatpush2.msra.mxu0 0.0
    %128 = vmatprep.subr.mxu0 0.0
    %129 = vmatpush2.msra.mxu0 0.0
    %130 = vmatprep.subr.mxu0 0.0
    %131 = vmatpush2.msra.mxu0 0.0
    %132 = vmatprep.mubr.f32.mxu0 0.0
    %133 = vmatmul.mubr.f32.gmra.mxu0 %v41
    %v134 = vpop.f32.mrf.mxu0
    %v135 = vadd.f32 0.0, %v134
    %v136 = vpop.f32.mrf.mxu0
    %137 = vmatprep.mubr.f32.mxu0 0.0
    %138 = vmatmul.mubr.f32.gmra.mxu0 %v44
    %v139 = vpop.f32.mrf.mxu0
    %v140 = vadd.f32 0.0, %v139
    %v141 = vpop.f32.mrf.mxu0
    %142 = vmatprep.mubr.f32.mxu0 0.0
    %143 = vmatmul.mubr.f32.gmra.mxu0 %v47
    %v144 = vpop.f32.mrf.mxu0
    %v145 = vadd.f32 0.0, %v144
    %v146 = vpop.f32.mrf.mxu0
    %147 = vmatprep.mubr.f32.mxu0 0.0
    %148 = vmatmul.mubr.f32.gmra.mxu0 %v50
    %v149 = vpop.f32.mrf.mxu0
    %v150 = vadd.f32 0.0, %v149
    %v151 = vpop.f32.mrf.mxu0
    %152 = vmatprep.mubr.f32.mxu0 0.0
    %153 = vmatmul.mubr.f32.gmra.mxu0 %v53
    %v154 = vpop.f32.mrf.mxu0
    %v155 = vadd.f32 0.0, %v154
    %v156 = vpop.f32.mrf.mxu0
    %157 = vmatprep.mubr.f32.mxu0 0.0
    %158 = vmatmul.mubr.f32.gmra.mxu0 %v56
    %v159 = vpop.f32.mrf.mxu0
    %v160 = vadd.f32 0.0, %v159
    %v161 = vpop.f32.mrf.mxu0
    %162 = vmatprep.mubr.f32.mxu0 0.0
    %163 = vmatmul.mubr.f32.gmra.mxu0 %v59
    %v164 = vpop.f32.mrf.mxu0
    %v165 = vadd.f32 0.0, %v164
    %v166 = vpop.f32.mrf.mxu0
    %167 = vmatprep.mubr.f32.mxu0 0.0
    %168 = vmatmul.mubr.f32.gmra.mxu0 %v62
    %v169 = vpop.f32.mrf.mxu0
    %v170 = vadd.f32 0.0, %v169
    %v171 = vpop.f32.mrf.mxu0
    %172 = vdwg.mxu0
    %v173 = vld [vmem:[%s2] sm:$0x1]
    %v175 = vlaneseq
    %v176 = vshrl.u32 %v175, 7
    %v177 = vsub.s32 0, %v176
    %v178 = vrot.slane %v173, %v177
    %v180 = vmul.f32 %v135, %v178
    %v181 = vmul.f32 %v140, %v178
    %v182 = vmul.f32 %v145, %v178
    %v183 = vmul.f32 %v150, %v178
    %v184 = vmul.f32 %v155, %v178
    %v185 = vmul.f32 %v160, %v178
    %v186 = vmul.f32 %v165, %v178
    %v187 = vmul.f32 %v170, %v178
    %v188 = vld [vmem:[%s3] sm:$0x1]
    %v190 = vlaneseq
    %v191 = vshrl.u32 %v190, 7
    %v192 = vsub.s32 0, %v191
    %v193 = vrot.slane %v188, %v192
    %v195 = vadd.f32 %v180, %v193
    %v196 = vadd.f32 %v181, %v193
    %v197 = vadd.f32 %v182, %v193
    %v198 = vadd.f32 %v183, %v193
    %v199 = vadd.f32 %v184, %v193
    %v200 = vadd.f32 %v185, %v193
    %v201 = vadd.f32 %v186, %v193
    %v202 = vadd.f32 %v187, %v193
    %v203 = vmax.f32 %v195, 0.0
    %v204 = vmax.f32 %v196, 0.0
    %v205 = vmax.f32 %v197, 0.0
    %v206 = vmax.f32 %v198, 0.0
    %v207 = vmax.f32 %v199, 0.0
    %v208 = vmax.f32 %v200, 0.0
    %v209 = vmax.f32 %v201, 0.0
    %v210 = vmax.f32 %v202, 0.0
    %v211 = vld [vmem:[%s4] sm:$0xff]
    %v212 = vld [vmem:[%s4 + $0x8] sm:$0xff]
    %vm213 = vnez %v211
    %vm214 = vnez %v212
    %v215 = vsel %vm213, 16843009, 0
    %v216 = vsel %vm214, 16843009, 0
    %v217 = vunpack.c.0.s8 %v215
    %v218 = vunpack.c.1.s8 %v215
    %v219 = vunpack.c.2.s8 %v215
    %v220 = vunpack.c.3.s8 %v215
    %v221 = vunpack.c.0.s8 %v216
    %v222 = vunpack.c.1.s8 %v216
    %v223 = vunpack.c.2.s8 %v216
    %v224 = vunpack.c.3.s8 %v216
    %v225 = vpack.c.b16 %v217, %v217
    %v226 = vpack.c.b8 %v225, %v225
    %v227 = vpack.c.b16 %v218, %v218
    %v228 = vpack.c.b8 %v227, %v227
    %v229 = vpack.c.b16 %v219, %v219
    %v230 = vpack.c.b8 %v229, %v229
    %v231 = vpack.c.b16 %v220, %v220
    %v232 = vpack.c.b8 %v231, %v231
    %v233 = vpack.c.b16 %v221, %v221
    %v234 = vpack.c.b8 %v233, %v233
    %v235 = vpack.c.b16 %v222, %v222
    %v236 = vpack.c.b8 %v235, %v235
    %v237 = vpack.c.b16 %v223, %v223
    %v238 = vpack.c.b8 %v237, %v237
    %v239 = vpack.c.b16 %v224, %v224
    %v240 = vpack.c.b8 %v239, %v239
    %vm241 = vnez %v226
    %vm242 = vnez %v228
    %vm243 = vnez %v230
    %vm244 = vnez %v232
    %vm245 = vnez %v234
    %vm246 = vnez %v236
    %vm247 = vnez %v238
    %vm248 = vnez %v240
    %v249 = vsel %vm241, 16843009, 0
    %v250 = vsel %vm242, 16843009, 0
    %v251 = vsel %vm243, 16843009, 0
    %v252 = vsel %vm244, 16843009, 0
    %v253 = vsel %vm245, 16843009, 0
    %v254 = vsel %vm246, 16843009, 0
    %v255 = vsel %vm247, 16843009, 0
    %v256 = vsel %vm248, 16843009, 0
    %v257 = vunpack.c.0.s8 %v249
    %v258 = vunpack.c.0.s8 %v250
    %v259 = vunpack.c.0.s8 %v251
    %v260 = vunpack.c.0.s8 %v252
    %v261 = vunpack.c.0.s8 %v253
    %v262 = vunpack.c.0.s8 %v254
    %v263 = vunpack.c.0.s8 %v255
    %v264 = vunpack.c.0.s8 %v256
    %vm265 = vcmp.ne.s32.totalorder %v257, 0
    %vm266 = vcmp.ne.s32.totalorder %v258, 0
    %vm267 = vcmp.ne.s32.totalorder %v259, 0
    %vm268 = vcmp.ne.s32.totalorder %v260, 0
    %vm269 = vcmp.ne.s32.totalorder %v261, 0
    %vm270 = vcmp.ne.s32.totalorder %v262, 0
    %vm271 = vcmp.ne.s32.totalorder %v263, 0
    %vm272 = vcmp.ne.s32.totalorder %v264, 0
    %v273 = vsel %vm265, %v203, %v135
    %v274 = vsel %vm266, %v204, %v140
    %v275 = vsel %vm267, %v205, %v145
    %v276 = vsel %vm268, %v206, %v150
    %v277 = vsel %vm269, %v207, %v155
    %v278 = vsel %vm270, %v208, %v160
    %v279 = vsel %vm271, %v209, %v165
    %v280 = vsel %vm272, %v210, %v170
    %281 = vst [vmem:[#allocation2] sm:$0xff] %v273
    %282 = vst [vmem:[#allocation2 + $0x8] sm:$0xff] %v274
    %283 = vst [vmem:[#allocation2 + $0x10] sm:$0xff] %v275
    %284 = vst [vmem:[#allocation2 + $0x18] sm:$0xff] %v276
    %285 = vst [vmem:[#allocation2 + $0x20] sm:$0xff] %v277
    %286 = vst [vmem:[#allocation2 + $0x28] sm:$0xff] %v278
    %287 = vst [vmem:[#allocation2 + $0x30] sm:$0xff] %v279
    %288 = vst [vmem:[#allocation2 + $0x38] sm:$0xff] %v280
    %289 = vst [vmem:[#allocation4] sm:$0xff] %v135
    %290 = vst [vmem:[#allocation4 + $0x8] sm:$0xff] %v140
    %291 = vst [vmem:[#allocation4 + $0x10] sm:$0xff] %v145
    %292 = vst [vmem:[#allocation4 + $0x18] sm:$0xff] %v150
    %293 = vst [vmem:[#allocation4 + $0x20] sm:$0xff] %v155
    %294 = vst [vmem:[#allocation4 + $0x28] sm:$0xff] %v160
    %295 = vst [vmem:[#allocation4 + $0x30] sm:$0xff] %v165
    %296 = vst [vmem:[#allocation4 + $0x38] sm:$0xff] %v170
    // Predicated region
    $region22: #{tpu_custom_call.1} parent=1 // pred_check
      _
    $region23: #{tpu_custom_call.1} parent=1 // pred_check_branch
      %298 = sbr.rel (0) target = $region25
    $region24: #{tpu_custom_call.1} parent=1 // pred_region
      %s300 = ssub.s32 1024, 1024
      %301 = vsyncadd [#allocation3], %s300
      %s302 = sshll.u32 [#allocation2], 4
      %s303 = int_to_ptr.vmem [resolvable:$true] %s302
      %308 = dma.vmem_to_hbm [thread:$0]  %s303, 1024, %s5, [#allocation3], 128, 128, 8
    $region25: #{tpu_custom_call.1} parent=1 // pred_fallthru
      _
    // Predicated region
    $region26: #{tpu_custom_call.1} parent=1 // pred_check
      _
    $region27: #{tpu_custom_call.1} parent=1 // pred_check_branch
      %310 = sbr.rel (0) target = $region29
    $region28: #{tpu_custom_call.1} parent=1 // pred_region
      %s312 = ssub.s32 1024, 1024
      %313 = vsyncadd [#allocation5], %s312
      %s314 = sshll.u32 [#allocation4], 4
      %s315 = int_to_ptr.vmem [resolvable:$true] %s314
      %320 = dma.vmem_to_hbm [thread:$0]  %s315, 1024, %s6, [#allocation5], 128, 128, 8
    $region29: #{tpu_custom_call.1} parent=1 // pred_fallthru
      _
    // Predicated region
    $region30: #{tpu_custom_call.1} parent=1 // pred_check
      _
    $region31: #{tpu_custom_call.1} parent=1 // pred_check_branch
      %322 = sbr.rel (0) target = $region33
    $region32: #{tpu_custom_call.1} parent=1 // pred_region
      %323 = dma.done [#allocation3], 1024
    $region33: #{tpu_custom_call.1} parent=1 // pred_fallthru
      _
    // Predicated region
    $region34: #{tpu_custom_call.1} parent=1 // pred_check
      _
    $region35: #{tpu_custom_call.1} parent=1 // pred_check_branch
      %325 = sbr.rel (0) target = $region37
    $region36: #{tpu_custom_call.1} parent=1 // pred_region
      %326 = dma.done [#allocation5], 1024
    $region37: #{tpu_custom_call.1} parent=1 // pred_fallthru
      _
    %327 = vsyncpa [#allocation3], 1
    %328 = vsyncpa [#allocation5], 1

</llo_original>
